<compile_context>
chip_gen: v5e
topology: v5e:2x2
jax: 0.10.0
libtpu: 0.0.40
codegen_flags: <defaults>
</compile_context>

<pallas_src>
import jax
import jax.numpy as jnp
import numpy as np
from jax.experimental import pallas as pl
from jax.experimental.pallas import tpu as pltpu

# --- module hyper-parameters (kept small & deterministic) ---
DEPTH = 3            # -> 2 hidden Linear(width, width) + ReLU layers
WIDTH = 32
K0 = 1
M = 2
MUL_TERM = float(2 ** (M + K0))
MLP_SCALE = 0.001
LEAKY_SLOPE = 0.01   # nn.LeakyReLU default
HALF_PI = float(np.pi / 2.0)

LANE = 128
TILE_N_MAX = 16384   # points per grid step (lane axis)
MIN_GRID_STEPS = 8   # aim for >= 8 steps: megacore sharding + pipelining


def ndp_kernel(x_ref, w_pe_ref, b_pe_ref, w_in_ref, b_in_ref, w_h_ref, b_h_ref,
               w_head_ref, b_head_ref, out_ref):
    x = x_ref[...]                                        # (3, T) lane-dense points

    # --- posenc: one MXU matmul builds [m*x, m*x + pi/2, 0] rows; a single sin
    #     yields [sin(mx), sin(my), sin(mz), cos(mx), cos(my), cos(mz), 0, 0].
    pe = jnp.sin(jnp.dot(w_pe_ref[...], x, preferred_element_type=jnp.float32)
                 + b_pe_ref[...])                         # (8, T)

    # --- input layer: Linear(6->W) + LeakyReLU (max form: 2 VPU ops) ---
    fea = jnp.dot(w_in_ref[...], pe,
                  preferred_element_type=jnp.float32) + b_in_ref[...]   # (W, T)
    fea = jnp.maximum(fea, LEAKY_SLOPE * fea)

    # --- MLP: (DEPTH-1) x [Linear(W, W) + ReLU], all on the MXU ---
    for i in range(DEPTH - 1):
        fea = jnp.dot(w_h_ref[i], fea,
                      preferred_element_type=jnp.float32) + b_h_ref[i]
        fea = jnp.maximum(fea, 0.0)

    # --- fused SE3 head (MLP_SCALE already folded into the weights):
    #     rows 0-2  : translation t
    #     rows 8-23 : phase-offset euler-angle rows, so one sin() gives every
    #                 needed sin/cos already on the sublane row the slab math
    #                 below expects.
    head = jnp.dot(w_head_ref[...], fea,
                   preferred_element_type=jnp.float32) + b_head_ref[...]   # (24, T)
    t3 = head[0:3]                                        # (3, T) translation
    trig = jnp.sin(head[8:24])                            # (16, T)

    sa, ca = trig[0:1], trig[1:2]                         # sin a, cos a   (1, T)
    m1 = trig[2:5]                                        # [cb, cb, -sb]  (3, T)
    m2 = trig[5:8]                                        # [sb, sb,  cb]  (3, T)
    cp = trig[8:11]                                       # [cc, sc,  1 ]  (3, T)
    cq = trig[11:14]                                      # [sc, -cc, 0 ]  (3, T)

    # R = Rz(c) @ Ry(b) @ Rx(a);  out = R @ x + t, factored into slab FMAs:
    #   g = sa*x1 + ca*x2 ; q = sa*x2 - ca*x1
    #   p = cb*x0 + sb*g  ; p2 = -sb*x0 + cb*g
    #   out = [cc*p + sc*q, sc*p - cc*q, p2] + t
    # TODO(synk): euler_to_SO3 source was not provided with the module; the
    # standard Rz@Ry@Rx convention is used (angles are ~1e-3, near-identity).
    x1, x2 = x[1:2], x[2:3]
    g = sa * x1 + ca * x2                                 # (1, T)
    q = sa * x2 - ca * x1                                 # (1, T)
    pp = m1 * x[0:1] + m2 * g                             # (3, T) = [p, p, p2]
    out_ref[...] = cp * pp + cq * q + t3                  # (3, T)


def prepare_kernel_params(params):
    """Torch-layout params -> kernel layout (feature-major, fused + phased heads)."""
    w_in, b_in, w_h, b_h, w_t, b_t, w_r, b_r = params

    # posenc generator: pe = sin(w_pe @ x + b_pe)
    eye = MUL_TERM * jnp.eye(3, dtype=jnp.float32)
    w_pe = jnp.concatenate([eye, eye, jnp.zeros((2, 3), jnp.float32)], axis=0)  # (8, 3)
    b_pe = jnp.zeros((8, 1), jnp.float32).at[3:6, 0].set(HALF_PI)

    # torch pe order is [sinx, cosx, siny, cosy, sinz, cosz]; the kernel slab is
    # [sinx, siny, sinz, cosx, cosy, cosz] -> permute w_in columns, pad to 8.
    perm = jnp.array([0, 2, 4, 1, 3, 5])
    w_in_k = jnp.zeros((WIDTH, 8), jnp.float32).at[:, :6].set(w_in[:, perm])
    b_in_k = b_in.reshape(WIDTH, 1)
    w_h_k = w_h                                          # (DEPTH-1, W, W), torch (out,in)
    b_h_k = b_h.reshape(DEPTH - 1, WIDTH, 1)

    # fused head (24, W): MLP_SCALE folded in.  Rotation rows are duplicated /
    # negated / phase-shifted so that trig = sin(head[8:24]) lands as:
    #   row 0: sa      row 1: ca
    #   rows 2-4 : [cb, cb, -sb]     rows 5-7  : [sb, sb, cb]
    #   rows 8-10: [cc, sc,  1 ]     rows 11-13: [sc, -cc, 0]
    s = MLP_SCALE
    wt, bt = s * w_t, s * b_t                            # (3, W), (3,)
    wr, br = s * w_r, s * b_r                            # (3, W), (3,)
    wa, wb, wc = wr[0:1], wr[1:2], wr[2:3]
    ba, bb, bc = br[0], br[1], br[2]
    zrow = jnp.zeros((1, WIDTH), jnp.float32)
    w_head = jnp.concatenate([
        wt, jnp.zeros((5, WIDTH), jnp.float32),          # rows 0-7  : t, pad
        wa, wa,                                          # rows 8-9  : a, a+pi/2
        wb, wb, -wb,                                     # rows 10-12: b+pi/2, b+pi/2, -b
        wb, wb, wb,                                      # rows 13-15: b, b, b+pi/2
        wc, wc, zrow,                                    # rows 16-18: c+pi/2, c, pi/2
        wc, wc, zrow,                                    # rows 19-21: c, c-pi/2, 0
        jnp.zeros((2, WIDTH), jnp.float32),              # rows 22-23: pad
    ], axis=0)
    b_head = jnp.stack([
        bt[0], bt[1], bt[2], 0.0, 0.0, 0.0, 0.0, 0.0,
        ba, ba + HALF_PI,
        bb + HALF_PI, bb + HALF_PI, -bb,
        bb, bb, bb + HALF_PI,
        bc + HALF_PI, bc, HALF_PI,
        bc, bc - HALF_PI, 0.0,
        0.0, 0.0,
    ]).astype(jnp.float32).reshape(24, 1)
    return w_pe, b_pe, w_in_k, b_in_k, w_h_k, b_h_k, w_head, b_head


def _const_spec(shape):
    zeros = (0,) * len(shape)
    return pl.BlockSpec(shape, lambda i, _z=zeros: _z)


def _round_up(v, m):
    return -(-v // m) * m


def _ndp_pallas(x_t, kparams):
    """x_t: (3, N) float32 -> (3, N) transformed points."""
    n = x_t.shape[1]
    n_lane = _round_up(n, LANE)
    tile_n = max(LANE, min(TILE_N_MAX,
                           _round_up(pl.cdiv(n_lane, MIN_GRID_STEPS), LANE)))
    grid = (pl.cdiv(n, tile_n),)   # last block may run partially OOB: safe, no
                                   # cross-lane coupling; OOB stores are masked
    flops_per_pt = 2 * (3 * 8 + 8 * WIDTH + (DEPTH - 1) * WIDTH * WIDTH + WIDTH * 24) + 60
    cost = pl.CostEstimate(
        flops=grid[0] * tile_n * flops_per_pt,
        transcendentals=grid[0] * tile_n * 24,   # 8 posenc + 16 head sin rows
        bytes_accessed=n * 3 * 4 * 2,
    )
    point_spec = pl.BlockSpec((3, tile_n), lambda i: (0, i))
    in_specs = [point_spec] + [_const_spec(p.shape) for p in kparams]

    return pl.pallas_call(
        ndp_kernel,
        out_shape=jax.ShapeDtypeStruct((3, n), jnp.float32),
        grid=grid,
        in_specs=in_specs,
        out_specs=point_spec,
        compiler_params=pltpu.CompilerParams(
            dimension_semantics=("parallel",),
            vmem_limit_bytes=32 * 1024 * 1024),
        cost_estimate=cost,
    )(x_t, *kparams)


@jax.jit
def _ndp_forward(x, params):
    kparams = prepare_kernel_params(params)
    out_t = _ndp_pallas(x.T, kparams)   # transposes live in the same XLA program
    return out_t.T


def ndp_layer_forward(x, params):
    """x: (N, 3) float32. Returns (x_, nonrigidity); nonrigidity is None
    (nonrigidity_est=False in this configuration)."""
    return _ndp_forward(x, params), None


# --- pure-JAX reference (mirrors the PyTorch forward, torch weight layout) ---
def ndp_layer_reference(x, params):
    w_in, b_in, w_h, b_h, w_t, b_t, w_r, b_r = params
    px, py, pz = x[:, 0:1], x[:, 1:2], x[:, 2:3]
    pe = jnp.concatenate([jnp.sin(px * MUL_TERM), jnp.cos(px * MUL_TERM),
                          jnp.sin(py * MUL_TERM), jnp.cos(py * MUL_TERM),
                          jnp.sin(pz * MUL_TERM), jnp.cos(pz * MUL_TERM)], axis=-1)
    fea = pe @ w_in.T + b_in
    fea = jnp.where(fea > 0, fea, LEAKY_SLOPE * fea)
    for i in range(DEPTH - 1):
        fea = jnp.maximum(fea @ w_h[i].T + b_h[i], 0.0)
    t = MLP_SCALE * (fea @ w_t.T + b_t)
    ang = MLP_SCALE * (fea @ w_r.T + b_r)
    sa, ca = jnp.sin(ang[:, 0]), jnp.cos(ang[:, 0])
    sb, cb = jnp.sin(ang[:, 1]), jnp.cos(ang[:, 1])
    sc, cc = jnp.sin(ang[:, 2]), jnp.cos(ang[:, 2])
    R = jnp.stack([
        jnp.stack([cb * cc, sa * sb * cc - ca * sc, ca * sb * cc + sa * sc], axis=-1),
        jnp.stack([cb * sc, sa * sb * sc + ca * cc, ca * sb * sc - sa * cc], axis=-1),
        jnp.stack([-sb, sa * cb, ca * cb], axis=-1),
    ], axis=-2)                                          # (N, 3, 3)
    x_ = jnp.einsum('nij,nj->ni', R, x) + t
    return x_


def init_params(key):
    """Torch-equivalent parameters: weights (out, in), xavier-uniform."""
    def xavier(k, shape, fan_in, fan_out):
        bound = float(np.sqrt(6.0 / (fan_in + fan_out)))
        return jax.random.uniform(k, shape, jnp.float32, -bound, bound)

    ks = jax.random.split(key, 8)
    w_in = xavier(ks[0], (WIDTH, 6), 6, WIDTH)                       # (out, in)
    b_in = jax.random.uniform(ks[1], (WIDTH,), jnp.float32, -0.1, 0.1)
    w_h = xavier(ks[2], (DEPTH - 1, WIDTH, WIDTH), WIDTH, WIDTH)     # (out, in)
    b_h = jax.random.uniform(ks[3], (DEPTH - 1, WIDTH), jnp.float32, -0.1, 0.1)
    w_t = xavier(ks[4], (3, WIDTH), WIDTH, 3)                        # (out, in)
    b_t = jax.random.uniform(ks[5], (3,), jnp.float32, -0.1, 0.1)
    w_r = xavier(ks[6], (3, WIDTH), WIDTH, 3)                        # (out, in)
    b_r = jax.random.uniform(ks[7], (3,), jnp.float32, -0.1, 0.1)
    return (w_in, b_in, w_h, b_h, w_t, b_t, w_r, b_r)


if __name__ == "__main__":
    key = jax.random.PRNGKey(0)
    k_x, k_p = jax.random.split(key)

    N = 500  # number of 3-D points (exercises the partial-last-block path)
    x = jax.random.uniform(k_x, (N, 3), jnp.float32, -1.0, 1.0)
    params = init_params(k_p)

    x_out, nonrigidity = ndp_layer_forward(x, params)
    x_out = jax.block_until_ready(x_out)

    x_ref = jax.block_until_ready(ndp_layer_reference(x, params))
    np.testing.assert_allclose(np.asarray(x_out), np.asarray(x_ref),
                               rtol=1e-5, atol=1e-5)
    assert x_out.shape == (N, 3)
    assert nonrigidity is None
    print("KERNEL_OK")
</pallas_src>

<mosaic_0001>
module attributes {stable_mosaic.version = 11 : i64} {
  func.func @ndp_kernel(%arg0: i32, %arg1: memref<3x128xf32, #tpu.memory_space<vmem>>, %arg2: memref<8x3xf32, #tpu.memory_space<vmem>>, %arg3: memref<8x1xf32, #tpu.memory_space<vmem>>, %arg4: memref<32x8xf32, #tpu.memory_space<vmem>>, %arg5: memref<32x1xf32, #tpu.memory_space<vmem>>, %arg6: memref<2x32x32xf32, #tpu.memory_space<vmem>>, %arg7: memref<2x32x1xf32, #tpu.memory_space<vmem>>, %arg8: memref<24x32xf32, #tpu.memory_space<vmem>>, %arg9: memref<24x1xf32, #tpu.memory_space<vmem>>, %arg10: memref<3x128xf32, #tpu.memory_space<vmem>>) attributes {dimension_semantics = [#tpu.dimension_semantics<parallel>], iteration_bounds = array<i64: 4>, scalar_prefetch = 0 : i64, scratch_operands = 0 : i64, tpu.core_type = #tpu.core_type<tc>, window_params = [{transform_indices = @transform_0, window_bounds = array<i64: 3, 128>}, {pipeline_mode = #tpu.pipeline_mode<synchronous>, transform_indices = @transform_1, window_bounds = array<i64: 8, 3>}, {pipeline_mode = #tpu.pipeline_mode<synchronous>, transform_indices = @transform_2, window_bounds = array<i64: 8, 1>}, {pipeline_mode = #tpu.pipeline_mode<synchronous>, transform_indices = @transform_3, window_bounds = array<i64: 32, 8>}, {pipeline_mode = #tpu.pipeline_mode<synchronous>, transform_indices = @transform_4, window_bounds = array<i64: 32, 1>}, {pipeline_mode = #tpu.pipeline_mode<synchronous>, transform_indices = @transform_5, window_bounds = array<i64: 2, 32, 32>}, {pipeline_mode = #tpu.pipeline_mode<synchronous>, transform_indices = @transform_6, window_bounds = array<i64: 2, 32, 1>}, {pipeline_mode = #tpu.pipeline_mode<synchronous>, transform_indices = @transform_7, window_bounds = array<i64: 24, 32>}, {pipeline_mode = #tpu.pipeline_mode<synchronous>, transform_indices = @transform_8, window_bounds = array<i64: 24, 1>}, {transform_indices = @transform_9, window_bounds = array<i64: 3, 128>}]} {
    %c0 = arith.constant 0 : index
    %c0_0 = arith.constant 0 : index
    %0 = vector.load %arg1[%c0, %c0_0] : memref<3x128xf32, #tpu.memory_space<vmem>>, vector<3x128xf32>
    %c0_1 = arith.constant 0 : index
    %c0_2 = arith.constant 0 : index
    %1 = vector.load %arg2[%c0_1, %c0_2] : memref<8x3xf32, #tpu.memory_space<vmem>>, vector<8x3xf32>
    %cst = arith.constant dense<0.000000e+00> : vector<8x128xf32>
    %2 = tpu.matmul %1, %0, %cst {dimension_numbers = #tpu.dot_dimension_numbers<[1], [0], [0], [1], [0, 0, 1, 1], [], []>} : vector<8x3xf32>, vector<3x128xf32>, vector<8x128xf32> -> vector<8x128xf32>
    %c0_3 = arith.constant 0 : index
    %c0_4 = arith.constant 0 : index
    %3 = vector.load %arg3[%c0_3, %c0_4] : memref<8x1xf32, #tpu.memory_space<vmem>>, vector<8x1xf32>
    %4 = vector.broadcast %3 : vector<8x1xf32> to vector<8x128xf32>
    %5 = arith.addf %2, %4 : vector<8x128xf32>
    %6 = math.sin %5 : vector<8x128xf32>
    %c0_5 = arith.constant 0 : index
    %c0_6 = arith.constant 0 : index
    %7 = vector.load %arg4[%c0_5, %c0_6] : memref<32x8xf32, #tpu.memory_space<vmem>>, vector<32x8xf32>
    %cst_7 = arith.constant dense<0.000000e+00> : vector<32x128xf32>
    %8 = tpu.matmul %7, %6, %cst_7 {dimension_numbers = #tpu.dot_dimension_numbers<[1], [0], [0], [1], [0, 0, 1, 1], [], []>} : vector<32x8xf32>, vector<8x128xf32>, vector<32x128xf32> -> vector<32x128xf32>
    %c0_8 = arith.constant 0 : index
    %c0_9 = arith.constant 0 : index
    %9 = vector.load %arg5[%c0_8, %c0_9] : memref<32x1xf32, #tpu.memory_space<vmem>>, vector<32x1xf32>
    %10 = vector.broadcast %9 : vector<32x1xf32> to vector<32x128xf32>
    %11 = arith.addf %8, %10 : vector<32x128xf32>
    %cst_10 = arith.constant 0.00999999977 : f32
    %12 = vector.broadcast %cst_10 : f32 to vector<32x128xf32>
    %13 = arith.mulf %12, %11 : vector<32x128xf32>
    %14 = arith.maximumf %11, %13 : vector<32x128xf32>
    %c0_11 = arith.constant 0 : index
    %c0_12 = arith.constant 0 : index
    %c0_13 = arith.constant 0 : index
    %15 = vector.load %arg6[%c0_11, %c0_12, %c0_13] : memref<2x32x32xf32, #tpu.memory_space<vmem>>, vector<1x32x32xf32>
    %16 = vector.shape_cast %15 : vector<1x32x32xf32> to vector<32x32xf32>
    %cst_14 = arith.constant dense<0.000000e+00> : vector<32x128xf32>
    %17 = tpu.matmul %16, %14, %cst_14 {dimension_numbers = #tpu.dot_dimension_numbers<[1], [0], [0], [1], [0, 0, 1, 1], [], []>} : vector<32x32xf32>, vector<32x128xf32>, vector<32x128xf32> -> vector<32x128xf32>
    %c0_15 = arith.constant 0 : index
    %c0_16 = arith.constant 0 : index
    %c0_17 = arith.constant 0 : index
    %18 = vector.load %arg7[%c0_15, %c0_16, %c0_17] : memref<2x32x1xf32, #tpu.memory_space<vmem>>, vector<1x32x1xf32>
    %19 = vector.shape_cast %18 : vector<1x32x1xf32> to vector<32x1xf32>
    %20 = vector.broadcast %19 : vector<32x1xf32> to vector<32x128xf32>
    %21 = arith.addf %17, %20 : vector<32x128xf32>
    %cst_18 = arith.constant 0.000000e+00 : f32
    %22 = vector.broadcast %cst_18 : f32 to vector<32x128xf32>
    %23 = arith.maximumf %21, %22 : vector<32x128xf32>
    %c1 = arith.constant 1 : index
    %c0_19 = arith.constant 0 : index
    %c0_20 = arith.constant 0 : index
    %24 = vector.load %arg6[%c1, %c0_19, %c0_20] : memref<2x32x32xf32, #tpu.memory_space<vmem>>, vector<1x32x32xf32>
    %25 = vector.shape_cast %24 : vector<1x32x32xf32> to vector<32x32xf32>
    %cst_21 = arith.constant dense<0.000000e+00> : vector<32x128xf32>
    %26 = tpu.matmul %25, %23, %cst_21 {dimension_numbers = #tpu.dot_dimension_numbers<[1], [0], [0], [1], [0, 0, 1, 1], [], []>} : vector<32x32xf32>, vector<32x128xf32>, vector<32x128xf32> -> vector<32x128xf32>
    %c1_22 = arith.constant 1 : index
    %c0_23 = arith.constant 0 : index
    %c0_24 = arith.constant 0 : index
    %27 = vector.load %arg7[%c1_22, %c0_23, %c0_24] : memref<2x32x1xf32, #tpu.memory_space<vmem>>, vector<1x32x1xf32>
    %28 = vector.shape_cast %27 : vector<1x32x1xf32> to vector<32x1xf32>
    %29 = vector.broadcast %28 : vector<32x1xf32> to vector<32x128xf32>
    %30 = arith.addf %26, %29 : vector<32x128xf32>
    %cst_25 = arith.constant 0.000000e+00 : f32
    %31 = vector.broadcast %cst_25 : f32 to vector<32x128xf32>
    %32 = arith.maximumf %30, %31 : vector<32x128xf32>
    %c0_26 = arith.constant 0 : index
    %c0_27 = arith.constant 0 : index
    %33 = vector.load %arg8[%c0_26, %c0_27] : memref<24x32xf32, #tpu.memory_space<vmem>>, vector<24x32xf32>
    %cst_28 = arith.constant dense<0.000000e+00> : vector<24x128xf32>
    %34 = tpu.matmul %33, %32, %cst_28 {dimension_numbers = #tpu.dot_dimension_numbers<[1], [0], [0], [1], [0, 0, 1, 1], [], []>} : vector<24x32xf32>, vector<32x128xf32>, vector<24x128xf32> -> vector<24x128xf32>
    %c0_29 = arith.constant 0 : index
    %c0_30 = arith.constant 0 : index
    %35 = vector.load %arg9[%c0_29, %c0_30] : memref<24x1xf32, #tpu.memory_space<vmem>>, vector<24x1xf32>
    %36 = vector.broadcast %35 : vector<24x1xf32> to vector<24x128xf32>
    %37 = arith.addf %34, %36 : vector<24x128xf32>
    %38 = vector.extract_strided_slice %37 {offsets = [0, 0], sizes = [3, 128], strides = [1, 1]} : vector<24x128xf32> to vector<3x128xf32>
    %39 = vector.extract_strided_slice %37 {offsets = [8, 0], sizes = [16, 128], strides = [1, 1]} : vector<24x128xf32> to vector<16x128xf32>
    %40 = math.sin %39 : vector<16x128xf32>
    %41 = vector.extract_strided_slice %40 {offsets = [0, 0], sizes = [1, 128], strides = [1, 1]} : vector<16x128xf32> to vector<1x128xf32>
    %42 = vector.extract_strided_slice %40 {offsets = [1, 0], sizes = [1, 128], strides = [1, 1]} : vector<16x128xf32> to vector<1x128xf32>
    %43 = vector.extract_strided_slice %40 {offsets = [2, 0], sizes = [3, 128], strides = [1, 1]} : vector<16x128xf32> to vector<3x128xf32>
    %44 = vector.extract_strided_slice %40 {offsets = [5, 0], sizes = [3, 128], strides = [1, 1]} : vector<16x128xf32> to vector<3x128xf32>
    %45 = vector.extract_strided_slice %40 {offsets = [8, 0], sizes = [3, 128], strides = [1, 1]} : vector<16x128xf32> to vector<3x128xf32>
    %46 = vector.extract_strided_slice %40 {offsets = [11, 0], sizes = [3, 128], strides = [1, 1]} : vector<16x128xf32> to vector<3x128xf32>
    %47 = vector.extract_strided_slice %0 {offsets = [1, 0], sizes = [1, 128], strides = [1, 1]} : vector<3x128xf32> to vector<1x128xf32>
    %48 = vector.extract_strided_slice %0 {offsets = [2, 0], sizes = [1, 128], strides = [1, 1]} : vector<3x128xf32> to vector<1x128xf32>
    %49 = arith.mulf %41, %47 : vector<1x128xf32>
    %50 = arith.mulf %42, %48 : vector<1x128xf32>
    %51 = arith.addf %49, %50 : vector<1x128xf32>
    %52 = arith.mulf %41, %48 : vector<1x128xf32>
    %53 = arith.mulf %42, %47 : vector<1x128xf32>
    %54 = arith.subf %52, %53 : vector<1x128xf32>
    %55 = vector.extract_strided_slice %0 {offsets = [0, 0], sizes = [1, 128], strides = [1, 1]} : vector<3x128xf32> to vector<1x128xf32>
    %56 = vector.broadcast %55 : vector<1x128xf32> to vector<3x128xf32>
    %57 = arith.mulf %43, %56 : vector<3x128xf32>
    %58 = vector.broadcast %51 : vector<1x128xf32> to vector<3x128xf32>
    %59 = arith.mulf %44, %58 : vector<3x128xf32>
    %60 = arith.addf %57, %59 : vector<3x128xf32>
    %61 = arith.mulf %45, %60 : vector<3x128xf32>
    %62 = vector.broadcast %54 : vector<1x128xf32> to vector<3x128xf32>
    %63 = arith.mulf %46, %62 : vector<3x128xf32>
    %64 = arith.addf %61, %63 : vector<3x128xf32>
    %65 = arith.addf %64, %38 : vector<3x128xf32>
    %c0_31 = arith.constant 0 : index
    %c0_32 = arith.constant 0 : index
    %66 = vector.load %arg10[%c0_31, %c0_32] : memref<3x128xf32, #tpu.memory_space<vmem>>, vector<3x128xf32>
    tpu.vector_store %arg10[%c0_31, %c0_32], %65 {strides = array<i32>} : memref<3x128xf32, #tpu.memory_space<vmem>>, vector<3x128xf32>,
    return
  }
  func.func @transform_0(%arg0: i32) -> (i32, i32) {
    %c0_i32 = arith.constant 0 : i32
    %c0_i32_0 = arith.constant 0 : i32
    return %c0_i32, %arg0 : i32, i32
  }
  func.func @transform_1(%arg0: i32) -> (i32, i32) {
    %c0_i32 = arith.constant 0 : i32
    %c0_i32_0 = arith.constant 0 : i32
    %c0_i32_1 = arith.constant 0 : i32
    return %c0_i32, %c0_i32_0 : i32, i32
  }
  func.func @transform_2(%arg0: i32) -> (i32, i32) {
    %c0_i32 = arith.constant 0 : i32
    %c0_i32_0 = arith.constant 0 : i32
    %c0_i32_1 = arith.constant 0 : i32
    return %c0_i32, %c0_i32_0 : i32, i32
  }
  func.func @transform_3(%arg0: i32) -> (i32, i32) {
    %c0_i32 = arith.constant 0 : i32
    %c0_i32_0 = arith.constant 0 : i32
    %c0_i32_1 = arith.constant 0 : i32
    return %c0_i32, %c0_i32_0 : i32, i32
  }
  func.func @transform_4(%arg0: i32) -> (i32, i32) {
    %c0_i32 = arith.constant 0 : i32
    %c0_i32_0 = arith.constant 0 : i32
    %c0_i32_1 = arith.constant 0 : i32
    return %c0_i32, %c0_i32_0 : i32, i32
  }
  func.func @transform_5(%arg0: i32) -> (i32, i32, i32) {
    %c0_i32 = arith.constant 0 : i32
    %c0_i32_0 = arith.constant 0 : i32
    %c0_i32_1 = arith.constant 0 : i32
    %c0_i32_2 = arith.constant 0 : i32
    return %c0_i32, %c0_i32_0, %c0_i32_1 : i32, i32, i32
  }
  func.func @transform_6(%arg0: i32) -> (i32, i32, i32) {
    %c0_i32 = arith.constant 0 : i32
    %c0_i32_0 = arith.constant 0 : i32
    %c0_i32_1 = arith.constant 0 : i32
    %c0_i32_2 = arith.constant 0 : i32
    return %c0_i32, %c0_i32_0, %c0_i32_1 : i32, i32, i32
  }
  func.func @transform_7(%arg0: i32) -> (i32, i32) {
    %c0_i32 = arith.constant 0 : i32
    %c0_i32_0 = arith.constant 0 : i32
    %c0_i32_1 = arith.constant 0 : i32
    return %c0_i32, %c0_i32_0 : i32, i32
  }
  func.func @transform_8(%arg0: i32) -> (i32, i32) {
    %c0_i32 = arith.constant 0 : i32
    %c0_i32_0 = arith.constant 0 : i32
    %c0_i32_1 = arith.constant 0 : i32
    return %c0_i32, %c0_i32_0 : i32, i32
  }
  func.func @transform_9(%arg0: i32) -> (i32, i32) {
    %c0_i32 = arith.constant 0 : i32
    %c0_i32_0 = arith.constant 0 : i32
    return %c0_i32, %arg0 : i32, i32
  }
}

</mosaic_0001>

<llo_original>
// kernel: _ndp_forward.1
$region0: #{_ndp_forward.1}
  #allocation0 [shape = 'u32[]', space=smem, size = 0x4, offset = 0x4, fixed_abs, tag = 'smem constant byte address 0x4 - core index']
  #allocation1 [shape = 'u32[72,128]{1,0:T(1,128)}', space=vmem, size = 0x9000, scoped, tag = 'internal scratch']
  %s0 = inlined_call_operand.vmem [shape: f32[3,500], index: 0, kind: input, shape index: {}]
  %s1 = inlined_call_operand.vmem [shape: f32[8,3], index: 1, kind: input, shape index: {}]
  %s2 = inlined_call_operand.vmem [shape: f32[8,1], index: 2, kind: input, shape index: {}]
  %s3 = inlined_call_operand.vmem [shape: f32[32,8], index: 3, kind: input, shape index: {}]
  %s4 = inlined_call_operand.vmem [shape: f32[32,1], index: 4, kind: input, shape index: {}]
  %s5 = inlined_call_operand.vmem [shape: f32[2,32,32], index: 5, kind: input, shape index: {}]
  %s6 = inlined_call_operand.vmem [shape: f32[2,32,1], index: 6, kind: input, shape index: {}]
  %s7 = inlined_call_operand.vmem [shape: f32[24,32], index: 7, kind: input, shape index: {}]
  %s8 = inlined_call_operand.vmem [shape: f32[24,1], index: 8, kind: input, shape index: {}]
  %s9 = inlined_call_operand.hbm [shape: f32[3,500], index: 9, kind: output, shape index: {}]
  %s10 = sld [smem:[#allocation0]]
  $region69: #{_ndp_forward.1} parent=0
    _
  %s12 = ssub.s32 1, %s10
  %s13 = scalar_select 0, %s12, %s10
  $region1: #{_ndp_forward.1} parent=0
    #allocation2 [shape = 'u8[4096]{0}', space=vmem, size = 0x1000, scoped, tag = 'output window, operand 0']
    #allocation3 [shape = 's32[2]{0}', space=sflag, size = 0x8, scoped, tag = 'scoped memory for _ndp_forward.1']
    %14 = vsyncpa [#allocation3], 0
    %s15 = scalar_lea.sflag [#allocation3], 1
    %16 = vsyncpa %s15, 0
    loop: start=0, step=1, limit=6
    $region2: #{_ndp_forward.1} parent=1 // loop_pre_header
      _
    $region3: #{_ndp_forward.1} parent=1 // loop_header
      %s18 = sphi 0, %s22
      %p19 = scmp.ge.s32.totalorder %s18, 6
      %s28 = sphi 0, %s30
      %s31 = sphi 0, %s28
      %s32 = sphi 0, %s31
      %s48 = sphi 0, %s32
      %s52 = sphi 0, %s52
      %s54 = sphi 0, %s52
      %s55 = sphi 0, %s54
      %s69 = sphi 0, %s55
      %s73 = sphi 0, %s73
      %s75 = sphi 0, %s73
      %s76 = sphi 0, %s75
      %s90 = sphi 0, %s76
      %s94 = sphi 0, %s94
      %s96 = sphi 0, %s94
      %s97 = sphi 0, %s96
      %s111 = sphi 0, %s97
      %s115 = sphi 0, %s115
      %s117 = sphi 0, %s115
      %s118 = sphi 0, %s117
      %s132 = sphi 0, %s118
      %s136 = sphi 0, %s136
      %s138 = sphi 0, %s136
      %s139 = sphi 0, %s138
      %s153 = sphi 0, %s139
      %s157 = sphi 0, %s157
      %s159 = sphi 0, %s157
      %s160 = sphi 0, %s159
      %s174 = sphi 0, %s160
      %s178 = sphi 0, %s178
      %s180 = sphi 0, %s178
      %s181 = sphi 0, %s180
      %s195 = sphi 0, %s181
      %s199 = sphi 0, %s199
      %s201 = sphi 0, %s199
      %s202 = sphi 0, %s201
      %s216 = sphi 0, %s202
      %s222 = sphi 0, %s224
      %s225 = sphi 0, %s222
      %s226 = sphi 0, %s225
      %s242 = sphi 0, %s226
    $region4: #{_ndp_forward.1} parent=1 // loop_header_branch
      %21 = sbr.rel (%p19) target = $region8
    $region5: #{_ndp_forward.1} parent=1 // loop_body
      %s23 = ssub.s32 %s18, 1
      %s24 = ssub.s32 %s18, 2
      %s25 = sadd.s32 %s18, 1
      %s26 = ssub.s32 %s18, %s25
      %p27 = scmp.eq.s32.totalorder %s26, 0
      %s29 = sadd.s32 %s28, 1
      %s30 = scalar_select %p27, %s28, %s29
      %p33 = pneg %p27
      %p34 = scmp.eq.s32.totalorder %s18, 3
      %p35 = por %p33, %p34
      %p36 = scmp.ne.s32.totalorder %s28, %s31
      %p37 = scmp.eq.s32.totalorder %s18, 0
      %p38 = por %p36, %p37
      %p39 = scmp.ne.s32.totalorder %s28, %s31
      %p40 = scmp.eq.s32.totalorder %s23, 3
      %p41 = por %p39, %p40
      %p42 = scmp.ne.s32.totalorder %s31, %s32
      %p43 = scmp.eq.s32.totalorder %s23, 0
      %p44 = por %p42, %p43
      %p45 = scmp.ne.s32.totalorder %s31, %s32
      %p46 = scmp.eq.s32.totalorder %s24, 3
      %p47 = por %p45, %p46
      %p49 = scmp.ne.s32.totalorder %s32, %s48
      %p50 = scmp.eq.s32.totalorder %s24, 0
      %p51 = por %p49, %p50
      %s53 = sadd.s32 %s52, 1
      %p56 = scmp.eq.s32.totalorder %s18, 3
      %p57 = scmp.ne.s32.totalorder %s52, %s54
      %p58 = scmp.eq.s32.totalorder %s18, 0
      %p59 = por %p57, %p58
      %p60 = scmp.ne.s32.totalorder %s52, %s54
      %p61 = scmp.eq.s32.totalorder %s23, 3
      %p62 = por %p60, %p61
      %p63 = scmp.ne.s32.totalorder %s54, %s55
      %p64 = scmp.eq.s32.totalorder %s23, 0
      %p65 = por %p63, %p64
      %p66 = scmp.ne.s32.totalorder %s54, %s55
      %p67 = scmp.eq.s32.totalorder %s24, 3
      %p68 = por %p66, %p67
      %p70 = scmp.ne.s32.totalorder %s55, %s69
      %p71 = scmp.eq.s32.totalorder %s24, 0
      %p72 = por %p70, %p71
      %s74 = sadd.s32 %s73, 1
      %p77 = scmp.eq.s32.totalorder %s18, 3
      %p78 = scmp.ne.s32.totalorder %s73, %s75
      %p79 = scmp.eq.s32.totalorder %s18, 0
      %p80 = por %p78, %p79
      %p81 = scmp.ne.s32.totalorder %s73, %s75
      %p82 = scmp.eq.s32.totalorder %s23, 3
      %p83 = por %p81, %p82
      %p84 = scmp.ne.s32.totalorder %s75, %s76
      %p85 = scmp.eq.s32.totalorder %s23, 0
      %p86 = por %p84, %p85
      %p87 = scmp.ne.s32.totalorder %s75, %s76
      %p88 = scmp.eq.s32.totalorder %s24, 3
      %p89 = por %p87, %p88
      %p91 = scmp.ne.s32.totalorder %s76, %s90
      %p92 = scmp.eq.s32.totalorder %s24, 0
      %p93 = por %p91, %p92
      %s95 = sadd.s32 %s94, 1
      %p98 = scmp.eq.s32.totalorder %s18, 3
      %p99 = scmp.ne.s32.totalorder %s94, %s96
      %p100 = scmp.eq.s32.totalorder %s18, 0
      %p101 = por %p99, %p100
      %p102 = scmp.ne.s32.totalorder %s94, %s96
      %p103 = scmp.eq.s32.totalorder %s23, 3
      %p104 = por %p102, %p103
      %p105 = scmp.ne.s32.totalorder %s96, %s97
      %p106 = scmp.eq.s32.totalorder %s23, 0
      %p107 = por %p105, %p106
      %p108 = scmp.ne.s32.totalorder %s96, %s97
      %p109 = scmp.eq.s32.totalorder %s24, 3
      %p110 = por %p108, %p109
      %p112 = scmp.ne.s32.totalorder %s97, %s111
      %p113 = scmp.eq.s32.totalorder %s24, 0
      %p114 = por %p112, %p113
      %s116 = sadd.s32 %s115, 1
      %p119 = scmp.eq.s32.totalorder %s18, 3
      %p120 = scmp.ne.s32.totalorder %s115, %s117
      %p121 = scmp.eq.s32.totalorder %s18, 0
      %p122 = por %p120, %p121
      %p123 = scmp.ne.s32.totalorder %s115, %s117
      %p124 = scmp.eq.s32.totalorder %s23, 3
      %p125 = por %p123, %p124
      %p126 = scmp.ne.s32.totalorder %s117, %s118
      %p127 = scmp.eq.s32.totalorder %s23, 0
      %p128 = por %p126, %p127
      %p129 = scmp.ne.s32.totalorder %s117, %s118
      %p130 = scmp.eq.s32.totalorder %s24, 3
      %p131 = por %p129, %p130
      %p133 = scmp.ne.s32.totalorder %s118, %s132
      %p134 = scmp.eq.s32.totalorder %s24, 0
      %p135 = por %p133, %p134
      %s137 = sadd.s32 %s136, 1
      %p140 = scmp.eq.s32.totalorder %s18, 3
      %p141 = scmp.ne.s32.totalorder %s136, %s138
      %p142 = scmp.eq.s32.totalorder %s18, 0
      %p143 = por %p141, %p142
      %p144 = scmp.ne.s32.totalorder %s136, %s138
      %p145 = scmp.eq.s32.totalorder %s23, 3
      %p146 = por %p144, %p145
      %p147 = scmp.ne.s32.totalorder %s138, %s139
      %p148 = scmp.eq.s32.totalorder %s23, 0
      %p149 = por %p147, %p148
      %p150 = scmp.ne.s32.totalorder %s138, %s139
      %p151 = scmp.eq.s32.totalorder %s24, 3
      %p152 = por %p150, %p151
      %p154 = scmp.ne.s32.totalorder %s139, %s153
      %p155 = scmp.eq.s32.totalorder %s24, 0
      %p156 = por %p154, %p155
      %s158 = sadd.s32 %s157, 1
      %p161 = scmp.eq.s32.totalorder %s18, 3
      %p162 = scmp.ne.s32.totalorder %s157, %s159
      %p163 = scmp.eq.s32.totalorder %s18, 0
      %p164 = por %p162, %p163
      %p165 = scmp.ne.s32.totalorder %s157, %s159
      %p166 = scmp.eq.s32.totalorder %s23, 3
      %p167 = por %p165, %p166
      %p168 = scmp.ne.s32.totalorder %s159, %s160
      %p169 = scmp.eq.s32.totalorder %s23, 0
      %p170 = por %p168, %p169
      %p171 = scmp.ne.s32.totalorder %s159, %s160
      %p172 = scmp.eq.s32.totalorder %s24, 3
      %p173 = por %p171, %p172
      %p175 = scmp.ne.s32.totalorder %s160, %s174
      %p176 = scmp.eq.s32.totalorder %s24, 0
      %p177 = por %p175, %p176
      %s179 = sadd.s32 %s178, 1
      %p182 = scmp.eq.s32.totalorder %s18, 3
      %p183 = scmp.ne.s32.totalorder %s178, %s180
      %p184 = scmp.eq.s32.totalorder %s18, 0
      %p185 = por %p183, %p184
      %p186 = scmp.ne.s32.totalorder %s178, %s180
      %p187 = scmp.eq.s32.totalorder %s23, 3
      %p188 = por %p186, %p187
      %p189 = scmp.ne.s32.totalorder %s180, %s181
      %p190 = scmp.eq.s32.totalorder %s23, 0
      %p191 = por %p189, %p190
      %p192 = scmp.ne.s32.totalorder %s180, %s181
      %p193 = scmp.eq.s32.totalorder %s24, 3
      %p194 = por %p192, %p193
      %p196 = scmp.ne.s32.totalorder %s181, %s195
      %p197 = scmp.eq.s32.totalorder %s24, 0
      %p198 = por %p196, %p197
      %s200 = sadd.s32 %s199, 1
      %p203 = scmp.eq.s32.totalorder %s18, 3
      %p204 = scmp.ne.s32.totalorder %s199, %s201
      %p205 = scmp.eq.s32.totalorder %s18, 0
      %p206 = por %p204, %p205
      %p207 = scmp.ne.s32.totalorder %s199, %s201
      %p208 = scmp.eq.s32.totalorder %s23, 3
      %p209 = por %p207, %p208
      %p210 = scmp.ne.s32.totalorder %s201, %s202
      %p211 = scmp.eq.s32.totalorder %s23, 0
      %p212 = por %p210, %p211
      %p213 = scmp.ne.s32.totalorder %s201, %s202
      %p214 = scmp.eq.s32.totalorder %s24, 3
      %p215 = por %p213, %p214
      %p217 = scmp.ne.s32.totalorder %s202, %s216
      %p218 = scmp.eq.s32.totalorder %s24, 0
      %p219 = por %p217, %p218
      %s220 = ssub.s32 %s18, %s25
      %p221 = scmp.eq.s32.totalorder %s220, 0
      %s223 = sadd.s32 %s222, 1
      %s224 = scalar_select %p221, %s222, %s223
      %p227 = pneg %p221
      %p228 = scmp.eq.s32.totalorder %s18, 3
      %p229 = por %p227, %p228
      %p230 = scmp.ne.s32.totalorder %s222, %s225
      %p231 = scmp.eq.s32.totalorder %s18, 0
      %p232 = por %p230, %p231
      %p233 = scmp.ne.s32.totalorder %s222, %s225
      %p234 = scmp.eq.s32.totalorder %s23, 3
      %p235 = por %p233, %p234
      %p236 = scmp.ne.s32.totalorder %s225, %s226
      %p237 = scmp.eq.s32.totalorder %s23, 0
      %p238 = por %p236, %p237
      %p239 = scmp.ne.s32.totalorder %s225, %s226
      %p240 = scmp.eq.s32.totalorder %s24, 3
      %p241 = por %p239, %p240
      %p243 = scmp.ne.s32.totalorder %s226, %s242
      %p244 = scmp.eq.s32.totalorder %s24, 0
      %p245 = por %p243, %p244
      %p246 = scmp.le.s32.totalorder 1, %s18
      %p247 = scmp.lt.s32.totalorder %s18, 5
      %p248 = pnand %p246, %p247
      %p249 = pneg %p248
      // Predicated region
      $region9: #{_ndp_forward.1} parent=5 // pred_check
        _
      $region10: #{_ndp_forward.1} parent=5 // pred_check_branch
        %251 = sbr.rel (%p248) target = $region12
      $region11: #{_ndp_forward.1} parent=5 // pred_region
        %s252 = ssub.s32 %s18, 1
        // Predicated region
        $region13: #{_ndp_forward.1} parent=11 // pred_check
          %p253 = pneg %p65
        $region14: #{_ndp_forward.1} parent=11 // pred_check_branch
          %255 = sbr.rel (%p253) target = $region16
        $region15: #{_ndp_forward.1} parent=11 // pred_region
          _
        $region16: #{_ndp_forward.1} parent=11 // pred_fallthru
          _
        // Predicated region
        $region17: #{_ndp_forward.1} parent=11 // pred_check
          %p256 = pneg %p86
        $region18: #{_ndp_forward.1} parent=11 // pred_check_branch
          %258 = sbr.rel (%p256) target = $region20
        $region19: #{_ndp_forward.1} parent=11 // pred_region
          _
        $region20: #{_ndp_forward.1} parent=11 // pred_fallthru
          _
        // Predicated region
        $region21: #{_ndp_forward.1} parent=11 // pred_check
          %p259 = pneg %p107
        $region22: #{_ndp_forward.1} parent=11 // pred_check_branch
          %261 = sbr.rel (%p259) target = $region24
        $region23: #{_ndp_forward.1} parent=11 // pred_region
          _
        $region24: #{_ndp_forward.1} parent=11 // pred_fallthru
          _
        // Predicated region
        $region25: #{_ndp_forward.1} parent=11 // pred_check
          %p262 = pneg %p128
        $region26: #{_ndp_forward.1} parent=11 // pred_check_branch
          %264 = sbr.rel (%p262) target = $region28
        $region27: #{_ndp_forward.1} parent=11 // pred_region
          _
        $region28: #{_ndp_forward.1} parent=11 // pred_fallthru
          _
        // Predicated region
        $region29: #{_ndp_forward.1} parent=11 // pred_check
          %p265 = pneg %p149
        $region30: #{_ndp_forward.1} parent=11 // pred_check_branch
          %267 = sbr.rel (%p265) target = $region32
        $region31: #{_ndp_forward.1} parent=11 // pred_region
          _
        $region32: #{_ndp_forward.1} parent=11 // pred_fallthru
          _
        // Predicated region
        $region33: #{_ndp_forward.1} parent=11 // pred_check
          %p268 = pneg %p170
        $region34: #{_ndp_forward.1} parent=11 // pred_check_branch
          %270 = sbr.rel (%p268) target = $region36
        $region35: #{_ndp_forward.1} parent=11 // pred_region
          _
        $region36: #{_ndp_forward.1} parent=11 // pred_fallthru
          _
        // Predicated region
        $region37: #{_ndp_forward.1} parent=11 // pred_check
          %p271 = pneg %p191
        $region38: #{_ndp_forward.1} parent=11 // pred_check_branch
          %273 = sbr.rel (%p271) target = $region40
        $region39: #{_ndp_forward.1} parent=11 // pred_region
          _
        $region40: #{_ndp_forward.1} parent=11 // pred_fallthru
          _
        // Predicated region
        $region41: #{_ndp_forward.1} parent=11 // pred_check
          %p274 = pneg %p212
        $region42: #{_ndp_forward.1} parent=11 // pred_check_branch
          %276 = sbr.rel (%p274) target = $region44
        $region43: #{_ndp_forward.1} parent=11 // pred_region
          _
        $region44: #{_ndp_forward.1} parent=11 // pred_fallthru
          _
      $region12: #{_ndp_forward.1} parent=5 // pred_fallthru
        _
      %p277 = scmp.lt.s32.totalorder %s18, 4
      // Predicated region
      $region45: #{_ndp_forward.1} parent=5 // pred_check
        %p278 = pneg %p277
      $region46: #{_ndp_forward.1} parent=5 // pred_check_branch
        %280 = sbr.rel (%p278) target = $region48
      $region47: #{_ndp_forward.1} parent=5 // pred_region
        // Predicated region
        $region49: #{_ndp_forward.1} parent=47 // pred_check
          %p281 = pneg %p38
        $region50: #{_ndp_forward.1} parent=47 // pred_check_branch
          %283 = sbr.rel (%p281) target = $region52
        $region51: #{_ndp_forward.1} parent=47 // pred_region
          %p284 = scmp.lt.s32.totalorder %s18, 3
          %s285 = scalar_select %p284, %s18, 3
          %s286 = smul.addr %s285, 4
          %s287 = scalar_lea.vmem %s0, %s286
        $region52: #{_ndp_forward.1} parent=47 // pred_fallthru
          _
      $region48: #{_ndp_forward.1} parent=5 // pred_fallthru
        _
      %p288 = scmp.le.s32.totalorder 1, %s18
      %p289 = scmp.lt.s32.totalorder %s18, 5
      %p290 = pnand %p288, %p289
      %p291 = pneg %p290
      // Predicated region
      $region53: #{_ndp_forward.1} parent=5 // pred_check
        _
      $region54: #{_ndp_forward.1} parent=5 // pred_check_branch
        %293 = sbr.rel (%p290) target = $region56
      $region55: #{_ndp_forward.1} parent=5 // pred_region
        %s294 = ssub.s32 %s18, 1
        %p295 = scmp.lt.s32.totalorder %s23, 3
        %s296 = scalar_select %p295, %s23, 3
        %s297 = smul.addr %s296, 4
        %s298 = scalar_lea.vmem %s0, %s297
        %p299 = pneg %p44
        %p300 = pneg %p41
        %p301 = pneg %p65
        %p302 = pneg %p62
        %p303 = pneg %p86
        %p304 = pneg %p83
        %p305 = pneg %p107
        %p306 = pneg %p104
        %p307 = pneg %p128
        %p308 = pneg %p125
        %p309 = pneg %p149
        %p310 = pneg %p146
        %p311 = pneg %p170
        %p312 = pneg %p167
        %p313 = pneg %p191
        %p314 = pneg %p188
        %p315 = pneg %p212
        %p316 = pneg %p209
        %p317 = pneg %p238
        %p318 = pneg %p235
        %s319 = sand.u32 %s225, 1
        %s320 = scalar_lea.sflag [#allocation3], %s319
        %s321 = sand.u32 %s225, 1
        %s322 = smul.addr %s321, 4
        %s323 = scalar_lea.vmem [#allocation2], %s322
        %p324 = scmp.lt.s32.totalorder %s23, 3
        %s325 = scalar_select %p324, %s23, 3
        %s326 = smul.addr %s325, 4
        %s327 = scalar_lea.vmem %s0, %s326
        %v328 = vld [vmem:[%s327] sm:$0x7]
        %v329 = vld [vmem:[%s1] sm:$0xff]
        %v330 = vld [vmem:[%s2] sm:$0xff]
        %332 = vset.pattern.permute.xlu0 0
        %333 = vperm.xlu0 %332, %v330
        %v334 = vpop.permute.xlu0 %333
        %vm336 = vcmask 23552
        %v338 = vsel %vm336, %v329, 0
        %vm340 = vcmask 1042432
        %v342 = vsel %vm340, %v328, 0
        %344 = vmatpush.msra.mxu0 0.0
        %345 = vmatpush.msra.mxu0 0.0
        %346 = vmatpush.msra.mxu0 0.0
        %347 = vmatpush.msra.mxu0 0.0
        %348 = vmatpush.msra.mxu0 0.0
        %349 = vmatpush.msra.mxu0 0.0
        %350 = vmatpush.msra.mxu0 0.0
        %351 = vmatpush.msra.mxu0 0.0
        %352 = vmatpush.msra.mxu0 0.0
        %353 = vmatpush.msra.mxu0 0.0
        %354 = vmatpush.msra.mxu0 0.0
        %355 = vmatpush.msra.mxu0 0.0
        %356 = vmatpush.msra.mxu0 0.0
        %357 = vmatpush.msra.mxu0 0.0
        %358 = vmatpush.msra.mxu0 0.0
        %359 = vmatpush.msra.mxu0 %v342
        %360 = vmatmul.f32.gmra.mxu0 %v338
        %v361 = vpop.f32.mrf.mxu0
        %v362 = vadd.f32 %v334, %v361
        %363 = vdwg.mxu0
        %v364 = vand.u32 2147483647, %v362
        %vm365 = vcmp.le.f32.partialorder %v364, 0.7853982
        %vm366 = vcmp.lt.s32.totalorder %v362, 0
        %v367 = vand.u32 %v362, 2139095040
        %v368 = vshrl.u32 %v367, 23
        %v369 = vsub.s32 %v368, 127
        %v370 = vand.u32 2147483647, %v362
        %v371 = vand.u32 %v370, 8388607
        %v372 = vor.u32 %v371, 8388608
        %v373 = vsub.s32 0, %v372
        %v374 = vadd.s32 %v369, 1
        %vm375 = vcmp.gt.s32.totalorder %v374, 0
        %v376 = vsel %vm375, %v374, 0
        %v377 = vshrl.u32 %v376, 5
        %v378 = vand.u32 %v376, 31
        %v379 = vsub.s32 32, %v378
        %v380 = vshrl.u32 683565275, %v379
        %v381 = vshll.u32 683565275, %v378
        %v382 = vshrl.u32 2475754826, %v379
        %v383 = vor.u32 %v381, %v382
        %v384 = vshll.u32 2475754826, %v378
        %v385 = vshrl.u32 2131351028, %v379
        %v386 = vor.u32 %v384, %v385
        %v387 = vshll.u32 2131351028, %v378
        %v388 = vshrl.u32 2102212464, %v379
        %v389 = vor.u32 %v387, %v388
        %v390 = vshll.u32 2102212464, %v378
        %v391 = vshrl.u32 920167782, %v379
        %v392 = vor.u32 %v390, %v391
        %v393 = vshll.u32 920167782, %v378
        %v394 = vshrl.u32 1326507024, %v379
        %v395 = vor.u32 %v393, %v394
        %vm396 = vcmp.lt.s32.totalorder %v377, 1
        %vm397 = vcmp.lt.s32.totalorder %v377, 2
        %vm398 = vcmp.lt.s32.totalorder %v377, 3
        %vm399 = vcmp.lt.s32.totalorder %v377, 4
        %v400 = vsel %vm396, %v380, %v383
        %v401 = vsel %vm399, %v389, 2102212464
        %v402 = vsel %vm398, %v386, %v401
        %v403 = vsel %vm397, %v400, %v402
        %v404 = vsel %vm396, %v383, %v386
        %v405 = vsel %vm399, %v392, 920167782
        %v406 = vsel %vm398, %v389, %v405
        %v407 = vsel %vm397, %v404, %v406
        %v408 = vsel %vm396, %v386, %v389
        %v409 = vsel %vm399, %v395, 1326507024
        %v410 = vsel %vm398, %v392, %v409
        %v411 = vsel %vm397, %v408, %v410
        %v412 = vshll.u32 %v372, 8
        %v413 = vand.u32 %v412, 65535
        %v414 = vshrl.u32 %v412, 16
        %v415 = vand.u32 %v411, 65535
        %v416 = vshrl.u32 %v411, 16
        %v417 = vmul.u32 %v413, %v415
        %v418 = vmul.u32 %v413, %v416
        %v419 = vmul.u32 %v414, %v415
        %v420 = vmul.u32 %v414, %v416
        %v421 = vshll.u32 %v418, 16
        %v422 = vshrl.u32 %v418, 16
        %v423 = vshll.u32 %v419, 16
        %v424 = vshrl.u32 %v419, 16
        %vm425 = vc.u32 %v417, %v421
        %v426 = vsel %vm425, 1, 0
        %v427 = vadd.s32 %v417, %v421
        %v428 = vadd.s32 %v420, %v426
        %vm429 = vc.u32 %v427, %v423
        %v430 = vsel %vm429, 1, 0
        %v431 = vadd.s32 %v427, %v423
        %v432 = vadd.s32 %v428, %v430
        %v433 = vadd.s32 %v432, %v422
        %v434 = vadd.s32 %v433, %v424
        %v435 = vand.u32 %v412, 65535
        %v436 = vshrl.u32 %v412, 16
        %v437 = vand.u32 %v407, 65535
        %v438 = vshrl.u32 %v407, 16
        %v439 = vmul.u32 %v435, %v437
        %v440 = vmul.u32 %v435, %v438
        %v441 = vmul.u32 %v436, %v437
        %v442 = vmul.u32 %v436, %v438
        %v443 = vshll.u32 %v440, 16
        %v444 = vshrl.u32 %v440, 16
        %v445 = vshll.u32 %v441, 16
        %v446 = vshrl.u32 %v441, 16
        %vm447 = vc.u32 %v439, %v443
        %v448 = vsel %vm447, 1, 0
        %v449 = vadd.s32 %v439, %v443
        %v450 = vadd.s32 %v442, %v448
        %vm451 = vc.u32 %v449, %v445
        %v452 = vsel %vm451, 1, 0
        %v453 = vadd.s32 %v449, %v445
        %v454 = vadd.s32 %v450, %v452
        %v455 = vadd.s32 %v454, %v444
        %v456 = vadd.s32 %v455, %v446
        %v457 = vmul.u32 %v412, %v403
        %v458 = vadd.s32 %v434, %v453
        %vm459 = vc.u32 %v434, %v453
        %v460 = vadd.s32 %v456, 1
        %v461 = vsel %vm459, %v460, %v456
        %v462 = vadd.s32 %v457, %v461
        %v463 = vadd.s32 %v462, 536870912
        %v464 = vshrl.u32 %v463, 30
        %v465 = vshll.u32 %v464, 30
        %v466 = vsub.s32 %v462, %v465
        %vm467 = vcmp.lt.s32.totalorder %v466, 0
        %v468 = vsub.s32 0, %v466
        %v469 = vsel %vm467, %v468, %v466
        %v470 = vclz %v469
        %v471 = vsub.s32 %v470, 2
        %vm472 = vcmp.gt.s32.totalorder 0, %v471
        %v473 = vsel %vm472, 0, %v471
        %v474 = vsub.s32 32, %v473
        %v475 = vshll.u32 %v466, %v473
        %v476 = vshrl.u32 %v458, %v474
        %v477 = vor.u32 %v475, %v476
        %v478 = vsub.s32 4294967266, %v473
        %v479 = vadd.s32 %v478, 127
        %v480 = vshll.u32 %v479, 23
        %v481 = vor.u32 4788187, %v480
        %v482 = vand.u32 2147483647, %v481
        %v484 = vcvt.s32.f32 %v477
        %v485 = vmul.f32 %v484, %v482
        %v486 = vxor.u32 %v485, 2147483648
        %v487 = vsel %vm366, %v486, %v485
        %v488 = vsub.s32 4, %v464
        %v489 = vsel %vm366, %v488, %v464
        %v490 = vsel %vm365, %v362, %v487
        %v491 = vsel %vm365, 0, %v489
        %v492 = vmul.f32 %v490, %v490
        %v493 = vmul.f32 %v492, -0.001358992
        %v494 = vadd.f32 %v493, 0.041655596
        %v495 = vmul.f32 %v492, %v494
        %v496 = vadd.f32 %v495, -0.4999988
        %v497 = vmul.f32 %v492, %v496
        %v498 = vadd.f32 1.0, %v497
        %v499 = vmul.f32 %v490, %v490
        %v500 = vmul.f32 %v499, -0.00019511016
        %v501 = vadd.f32 %v500, 0.008332121
        %v502 = vmul.f32 %v499, %v501
        %v503 = vadd.f32 %v502, -0.16666654
        %v504 = vmul.f32 %v499, %v503
        %v505 = vadd.f32 %v504, 1.0
        %v506 = vmul.f32 %v505, %v490
        %vm507 = vweird.f32 %v362
        %v508 = vadd.s32 %v491, 3
        %v509 = vand.u32 %v508, 3
        %vm510 = vcmp.lt.s32.totalorder %v509, 2
        %vm511 = vcmp.eq.s32.totalorder %v509, 0
        %v512 = vxor.u32 %v506, 2147483648
        %v513 = vsel %vm511, %v498, %v512
        %vm514 = vcmp.eq.s32.totalorder %v509, 2
        %v515 = vxor.u32 %v498, 2147483648
        %v516 = vsel %vm514, %v515, %v506
        %v517 = vsel %vm510, %v513, %v516
        %v518 = vsel %vm507, nan, %v517
        %v519 = vld [vmem:[%s3] sm:$0xff]
        %v520 = vld [vmem:[%s3 + $0x8] sm:$0xff]
        %v521 = vld [vmem:[%s3 + $0x10] sm:$0xff]
        %v522 = vld [vmem:[%s3 + $0x18] sm:$0xff]
        %v523 = vld [vmem:[%s4] sm:$0xff]
        %v524 = vld [vmem:[%s4 + $0x8] sm:$0xff]
        %v525 = vld [vmem:[%s4 + $0x10] sm:$0xff]
        %v526 = vld [vmem:[%s4 + $0x18] sm:$0xff]
        %528 = vset.pattern.permute.xlu0 0
        %529 = vperm.xlu0 %528, %v523
        %v530 = vpop.permute.xlu0 %529
        %533 = vset.pattern.permute.xlu0 0
        %534 = vperm.xlu0 %533, %v524
        %v535 = vpop.permute.xlu0 %534
        %538 = vset.pattern.permute.xlu0 0
        %539 = vperm.xlu0 %538, %v525
        %v540 = vpop.permute.xlu0 %539
        %543 = vset.pattern.permute.xlu0 0
        %544 = vperm.xlu0 %543, %v526
        %v545 = vpop.permute.xlu0 %544
        %vm547 = vcmask 64512
        %v549 = vsel %vm547, %v519, 0
        %v552 = vsel %vm547, %v520, 0
        %v555 = vsel %vm547, %v521, 0
        %v558 = vsel %vm547, %v522, 0
        %560 = vmatpush.msra.mxu0 0.0
        %561 = vmatpush.msra.mxu0 0.0
        %562 = vmatpush.msra.mxu0 0.0
        %563 = vmatpush.msra.mxu0 0.0
        %564 = vmatpush.msra.mxu0 0.0
        %565 = vmatpush.msra.mxu0 0.0
        %566 = vmatpush.msra.mxu0 0.0
        %567 = vmatpush.msra.mxu0 0.0
        %568 = vmatpush.msra.mxu0 0.0
        %569 = vmatpush.msra.mxu0 0.0
        %570 = vmatpush.msra.mxu0 0.0
        %571 = vmatpush.msra.mxu0 0.0
        %572 = vmatpush.msra.mxu0 0.0
        %573 = vmatpush.msra.mxu0 0.0
        %574 = vmatpush.msra.mxu0 0.0
        %575 = vmatpush.msra.mxu0 %v518
        %576 = vmatmul.f32.gmra.mxu0 %v549
        %v577 = vpop.f32.mrf.mxu0
        %v578 = vadd.f32 %v530, %v577
        %579 = vmatmul.f32.gmra.mxu0 %v552
        %v580 = vpop.f32.mrf.mxu0
        %v581 = vadd.f32 %v535, %v580
        %582 = vmatmul.f32.gmra.mxu0 %v555
        %v583 = vpop.f32.mrf.mxu0
        %v584 = vadd.f32 %v540, %v583
        %585 = vmatmul.f32.gmra.mxu0 %v558
        %v586 = vpop.f32.mrf.mxu0
        %v587 = vadd.f32 %v545, %v586
        %588 = vdwg.mxu0
        %v589 = vmul.f32 %v578, 0.01
        %v590 = vmul.f32 %v581, 0.01
        %v591 = vmul.f32 %v584, 0.01
        %v592 = vmul.f32 %v587, 0.01
        %v593 = vmax.f32 %v578, %v589
        %v594 = vmax.f32 %v581, %v590
        %v595 = vmax.f32 %v584, %v591
        %v596 = vmax.f32 %v587, %v592
        %v597 = vld [vmem:[%s5] sm:$0xff]
        %v598 = vld [vmem:[%s5 + $0x8] sm:$0xff]
        %v599 = vld [vmem:[%s5 + $0x10] sm:$0xff]
        %v600 = vld [vmem:[%s5 + $0x18] sm:$0xff]
        %v601 = vld [vmem:[%s6] sm:$0xff]
        %v602 = vld [vmem:[%s6 + $0x8] sm:$0xff]
        %v603 = vld [vmem:[%s6 + $0x10] sm:$0xff]
        %v604 = vld [vmem:[%s6 + $0x18] sm:$0xff]
        %606 = vset.pattern.permute.xlu0 0
        %607 = vperm.xlu0 %606, %v601
        %v608 = vpop.permute.xlu0 %607
        %611 = vset.pattern.permute.xlu0 0
        %612 = vperm.xlu0 %611, %v602
        %v613 = vpop.permute.xlu0 %612
        %616 = vset.pattern.permute.xlu0 0
        %617 = vperm.xlu0 %616, %v603
        %v618 = vpop.permute.xlu0 %617
        %621 = vset.pattern.permute.xlu0 0
        %622 = vperm.xlu0 %621, %v604
        %v623 = vpop.permute.xlu0 %622
        %vm625 = vcmask 261120
        %v627 = vsel %vm625, %v597, 0
        %v630 = vsel %vm625, %v598, 0
        %v633 = vsel %vm625, %v599, 0
        %v636 = vsel %vm625, %v600, 0
        %638 = vmatpush.msra.mxu0 0.0
        %639 = vmatpush.msra.mxu0 0.0
        %640 = vmatpush.msra.mxu0 0.0
        %641 = vmatpush.msra.mxu0 0.0
        %642 = vmatpush.msra.mxu0 0.0
        %643 = vmatpush.msra.mxu0 0.0
        %644 = vmatpush.msra.mxu0 0.0
        %645 = vmatpush.msra.mxu0 0.0
        %646 = vmatpush.msra.mxu0 0.0
        %647 = vmatpush.msra.mxu0 0.0
        %648 = vmatpush.msra.mxu0 0.0
        %649 = vmatpush.msra.mxu0 0.0
        %650 = vmatpush.msra.mxu0 %v596
        %651 = vmatpush.msra.mxu0 %v595
        %652 = vmatpush.msra.mxu0 %v594
        %653 = vmatpush.msra.mxu0 %v593
        %654 = vmatmul.f32.gmra.mxu0 %v627
        %v655 = vpop.f32.mrf.mxu0
        %v656 = vadd.f32 %v608, %v655
        %657 = vmatmul.f32.gmra.mxu0 %v630
        %v658 = vpop.f32.mrf.mxu0
        %v659 = vadd.f32 %v613, %v658
        %660 = vmatmul.f32.gmra.mxu0 %v633
        %v661 = vpop.f32.mrf.mxu0
        %v662 = vadd.f32 %v618, %v661
        %663 = vmatmul.f32.gmra.mxu0 %v636
        %v664 = vpop.f32.mrf.mxu0
        %v665 = vadd.f32 %v623, %v664
        %666 = vdwg.mxu0
        %v667 = vmax.f32 %v656, 0.0
        %v668 = vmax.f32 %v659, 0.0
        %v669 = vmax.f32 %v662, 0.0
        %v670 = vmax.f32 %v665, 0.0
        %s671 = scalar_lea.vmem %s5, 32
        %v672 = vld [vmem:[%s671] sm:$0xff]
        %v673 = vld [vmem:[%s671 + $0x8] sm:$0xff]
        %v674 = vld [vmem:[%s671 + $0x10] sm:$0xff]
        %v675 = vld [vmem:[%s671 + $0x18] sm:$0xff]
        %s676 = scalar_lea.vmem %s6, 32
        %v677 = vld [vmem:[%s676] sm:$0xff]
        %v678 = vld [vmem:[%s676 + $0x8] sm:$0xff]
        %v679 = vld [vmem:[%s676 + $0x10] sm:$0xff]
        %v680 = vld [vmem:[%s676 + $0x18] sm:$0xff]
        %682 = vset.pattern.permute.xlu0 0
        %683 = vperm.xlu0 %682, %v677
        %v684 = vpop.permute.xlu0 %683
        %687 = vset.pattern.permute.xlu0 0
        %688 = vperm.xlu0 %687, %v678
        %v689 = vpop.permute.xlu0 %688
        %692 = vset.pattern.permute.xlu0 0
        %693 = vperm.xlu0 %692, %v679
        %v694 = vpop.permute.xlu0 %693
        %697 = vset.pattern.permute.xlu0 0
        %698 = vperm.xlu0 %697, %v680
        %v699 = vpop.permute.xlu0 %698
        %v702 = vsel %vm625, %v672, 0
        %v705 = vsel %vm625, %v673, 0
        %v708 = vsel %vm625, %v674, 0
        %v711 = vsel %vm625, %v675, 0
        %713 = vmatpush.msra.mxu0 0.0
        %714 = vmatpush.msra.mxu0 0.0
        %715 = vmatpush.msra.mxu0 0.0
        %716 = vmatpush.msra.mxu0 0.0
        %717 = vmatpush.msra.mxu0 0.0
        %718 = vmatpush.msra.mxu0 0.0
        %719 = vmatpush.msra.mxu0 0.0
        %720 = vmatpush.msra.mxu0 0.0
        %721 = vmatpush.msra.mxu0 0.0
        %722 = vmatpush.msra.mxu0 0.0
        %723 = vmatpush.msra.mxu0 0.0
        %724 = vmatpush.msra.mxu0 0.0
        %725 = vmatpush.msra.mxu0 %v670
        %726 = vmatpush.msra.mxu0 %v669
        %727 = vmatpush.msra.mxu0 %v668
        %728 = vmatpush.msra.mxu0 %v667
        %729 = vmatmul.f32.gmra.mxu0 %v702
        %v730 = vpop.f32.mrf.mxu0
        %v731 = vadd.f32 %v684, %v730
        %732 = vmatmul.f32.gmra.mxu0 %v705
        %v733 = vpop.f32.mrf.mxu0
        %v734 = vadd.f32 %v689, %v733
        %735 = vmatmul.f32.gmra.mxu0 %v708
        %v736 = vpop.f32.mrf.mxu0
        %v737 = vadd.f32 %v694, %v736
        %738 = vmatmul.f32.gmra.mxu0 %v711
        %v739 = vpop.f32.mrf.mxu0
        %v740 = vadd.f32 %v699, %v739
        %741 = vdwg.mxu0
        %v742 = vmax.f32 %v731, 0.0
        %v743 = vmax.f32 %v734, 0.0
        %v744 = vmax.f32 %v737, 0.0
        %v745 = vmax.f32 %v740, 0.0
        %v746 = vld [vmem:[%s7] sm:$0xff]
        %v747 = vld [vmem:[%s7 + $0x8] sm:$0xff]
        %v748 = vld [vmem:[%s7 + $0x10] sm:$0xff]
        %v749 = vld [vmem:[%s8] sm:$0xff]
        %v750 = vld [vmem:[%s8 + $0x8] sm:$0xff]
        %v751 = vld [vmem:[%s8 + $0x10] sm:$0xff]
        %753 = vset.pattern.permute.xlu0 0
        %754 = vperm.xlu0 %753, %v749
        %v755 = vpop.permute.xlu0 %754
        %758 = vset.pattern.permute.xlu0 0
        %759 = vperm.xlu0 %758, %v750
        %v760 = vpop.permute.xlu0 %759
        %763 = vset.pattern.permute.xlu0 0
        %764 = vperm.xlu0 %763, %v751
        %v765 = vpop.permute.xlu0 %764
        %v768 = vsel %vm625, %v746, 0
        %v771 = vsel %vm625, %v747, 0
        %v774 = vsel %vm625, %v748, 0
        %776 = vmatpush.msra.mxu0 0.0
        %777 = vmatpush.msra.mxu0 0.0
        %778 = vmatpush.msra.mxu0 0.0
        %779 = vmatpush.msra.mxu0 0.0
        %780 = vmatpush.msra.mxu0 0.0
        %781 = vmatpush.msra.mxu0 0.0
        %782 = vmatpush.msra.mxu0 0.0
        %783 = vmatpush.msra.mxu0 0.0
        %784 = vmatpush.msra.mxu0 0.0
        %785 = vmatpush.msra.mxu0 0.0
        %786 = vmatpush.msra.mxu0 0.0
        %787 = vmatpush.msra.mxu0 0.0
        %788 = vmatpush.msra.mxu0 %v745
        %789 = vmatpush.msra.mxu0 %v744
        %790 = vmatpush.msra.mxu0 %v743
        %791 = vmatpush.msra.mxu0 %v742
        %792 = vmatmul.f32.gmra.mxu0 %v768
        %v793 = vpop.f32.mrf.mxu0
        %v794 = vadd.f32 %v755, %v793
        %795 = vmatmul.f32.gmra.mxu0 %v771
        %v796 = vpop.f32.mrf.mxu0
        %v797 = vadd.f32 %v760, %v796
        %798 = vmatmul.f32.gmra.mxu0 %v774
        %v799 = vpop.f32.mrf.mxu0
        %v800 = vadd.f32 %v765, %v799
        %801 = vdwg.mxu0
        %v802 = vand.u32 2147483647, %v797
        %vm803 = vcmp.le.f32.partialorder %v802, 0.7853982
        %vm804 = vcmp.lt.s32.totalorder %v797, 0
        %v805 = vand.u32 %v797, 2139095040
        %v806 = vshrl.u32 %v805, 23
        %v807 = vsub.s32 %v806, 127
        %v808 = vand.u32 2147483647, %v797
        %v809 = vand.u32 %v808, 8388607
        %v810 = vor.u32 %v809, 8388608
        %v811 = vsub.s32 0, %v810
        %v812 = vadd.s32 %v807, 1
        %vm813 = vcmp.gt.s32.totalorder %v812, 0
        %v814 = vsel %vm813, %v812, 0
        %v815 = vshrl.u32 %v814, 5
        %v816 = vand.u32 %v814, 31
        %v817 = vsub.s32 32, %v816
        %v818 = vshrl.u32 683565275, %v817
        %v819 = vshll.u32 683565275, %v816
        %v820 = vshrl.u32 2475754826, %v817
        %v821 = vor.u32 %v819, %v820
        %v822 = vshll.u32 2475754826, %v816
        %v823 = vshrl.u32 2131351028, %v817
        %v824 = vor.u32 %v822, %v823
        %v825 = vshll.u32 2131351028, %v816
        %v826 = vshrl.u32 2102212464, %v817
        %v827 = vor.u32 %v825, %v826
        %v828 = vshll.u32 2102212464, %v816
        %v829 = vshrl.u32 920167782, %v817
        %v830 = vor.u32 %v828, %v829
        %v831 = vshll.u32 920167782, %v816
        %v832 = vshrl.u32 1326507024, %v817
        %v833 = vor.u32 %v831, %v832
        %vm834 = vcmp.lt.s32.totalorder %v815, 1
        %vm835 = vcmp.lt.s32.totalorder %v815, 2
        %vm836 = vcmp.lt.s32.totalorder %v815, 3
        %vm837 = vcmp.lt.s32.totalorder %v815, 4
        %v838 = vsel %vm834, %v818, %v821
        %v839 = vsel %vm837, %v827, 2102212464
        %v840 = vsel %vm836, %v824, %v839
        %v841 = vsel %vm835, %v838, %v840
        %v842 = vsel %vm834, %v821, %v824
        %v843 = vsel %vm837, %v830, 920167782
        %v844 = vsel %vm836, %v827, %v843
        %v845 = vsel %vm835, %v842, %v844
        %v846 = vsel %vm834, %v824, %v827
        %v847 = vsel %vm837, %v833, 1326507024
        %v848 = vsel %vm836, %v830, %v847
        %v849 = vsel %vm835, %v846, %v848
        %v850 = vshll.u32 %v810, 8
        %v851 = vand.u32 %v850, 65535
        %v852 = vshrl.u32 %v850, 16
        %v853 = vand.u32 %v849, 65535
        %v854 = vshrl.u32 %v849, 16
        %v855 = vmul.u32 %v851, %v853
        %v856 = vmul.u32 %v851, %v854
        %v857 = vmul.u32 %v852, %v853
        %v858 = vmul.u32 %v852, %v854
        %v859 = vshll.u32 %v856, 16
        %v860 = vshrl.u32 %v856, 16
        %v861 = vshll.u32 %v857, 16
        %v862 = vshrl.u32 %v857, 16
        %vm863 = vc.u32 %v855, %v859
        %v864 = vsel %vm863, 1, 0
        %v865 = vadd.s32 %v855, %v859
        %v866 = vadd.s32 %v858, %v864
        %vm867 = vc.u32 %v865, %v861
        %v868 = vsel %vm867, 1, 0
        %v869 = vadd.s32 %v865, %v861
        %v870 = vadd.s32 %v866, %v868
        %v871 = vadd.s32 %v870, %v860
        %v872 = vadd.s32 %v871, %v862
        %v873 = vand.u32 %v850, 65535
        %v874 = vshrl.u32 %v850, 16
        %v875 = vand.u32 %v845, 65535
        %v876 = vshrl.u32 %v845, 16
        %v877 = vmul.u32 %v873, %v875
        %v878 = vmul.u32 %v873, %v876
        %v879 = vmul.u32 %v874, %v875
        %v880 = vmul.u32 %v874, %v876
        %v881 = vshll.u32 %v878, 16
        %v882 = vshrl.u32 %v878, 16
        %v883 = vshll.u32 %v879, 16
        %v884 = vshrl.u32 %v879, 16
        %vm885 = vc.u32 %v877, %v881
        %v886 = vsel %vm885, 1, 0
        %v887 = vadd.s32 %v877, %v881
        %v888 = vadd.s32 %v880, %v886
        %vm889 = vc.u32 %v887, %v883
        %v890 = vsel %vm889, 1, 0
        %v891 = vadd.s32 %v887, %v883
        %v892 = vadd.s32 %v888, %v890
        %v893 = vadd.s32 %v892, %v882
        %v894 = vadd.s32 %v893, %v884
        %v895 = vmul.u32 %v850, %v841
        %v896 = vadd.s32 %v872, %v891
        %vm897 = vc.u32 %v872, %v891
        %v898 = vadd.s32 %v894, 1
        %v899 = vsel %vm897, %v898, %v894
        %v900 = vadd.s32 %v895, %v899
        %v901 = vadd.s32 %v900, 536870912
        %v902 = vshrl.u32 %v901, 30
        %v903 = vshll.u32 %v902, 30
        %v904 = vsub.s32 %v900, %v903
        %vm905 = vcmp.lt.s32.totalorder %v904, 0
        %v906 = vsub.s32 0, %v904
        %v907 = vsel %vm905, %v906, %v904
        %v908 = vclz %v907
        %v909 = vsub.s32 %v908, 2
        %vm910 = vcmp.gt.s32.totalorder 0, %v909
        %v911 = vsel %vm910, 0, %v909
        %v912 = vsub.s32 32, %v911
        %v913 = vshll.u32 %v904, %v911
        %v914 = vshrl.u32 %v896, %v912
        %v915 = vor.u32 %v913, %v914
        %v916 = vsub.s32 4294967266, %v911
        %v917 = vadd.s32 %v916, 127
        %v918 = vshll.u32 %v917, 23
        %v919 = vor.u32 4788187, %v918
        %v920 = vand.u32 2147483647, %v919
        %v922 = vcvt.s32.f32 %v915
        %v923 = vmul.f32 %v922, %v920
        %v924 = vxor.u32 %v923, 2147483648
        %v925 = vsel %vm804, %v924, %v923
        %v926 = vsub.s32 4, %v902
        %v927 = vsel %vm804, %v926, %v902
        %v928 = vsel %vm803, %v797, %v925
        %v929 = vsel %vm803, 0, %v927
        %v930 = vmul.f32 %v928, %v928
        %v931 = vmul.f32 %v930, -0.001358992
        %v932 = vadd.f32 %v931, 0.041655596
        %v933 = vmul.f32 %v930, %v932
        %v934 = vadd.f32 %v933, -0.4999988
        %v935 = vmul.f32 %v930, %v934
        %v936 = vadd.f32 1.0, %v935
        %v937 = vmul.f32 %v928, %v928
        %v938 = vmul.f32 %v937, -0.00019511016
        %v939 = vadd.f32 %v938, 0.008332121
        %v940 = vmul.f32 %v937, %v939
        %v941 = vadd.f32 %v940, -0.16666654
        %v942 = vmul.f32 %v937, %v941
        %v943 = vadd.f32 %v942, 1.0
        %v944 = vmul.f32 %v943, %v928
        %vm945 = vweird.f32 %v797
        %v946 = vadd.s32 %v929, 3
        %v947 = vand.u32 %v946, 3
        %vm948 = vcmp.lt.s32.totalorder %v947, 2
        %vm949 = vcmp.eq.s32.totalorder %v947, 0
        %v950 = vxor.u32 %v944, 2147483648
        %v951 = vsel %vm949, %v936, %v950
        %vm952 = vcmp.eq.s32.totalorder %v947, 2
        %v953 = vxor.u32 %v936, 2147483648
        %v954 = vsel %vm952, %v953, %v944
        %v955 = vsel %vm948, %v951, %v954
        %v956 = vsel %vm945, nan, %v955
        %v957 = vand.u32 2147483647, %v800
        %vm958 = vcmp.le.f32.partialorder %v957, 0.7853982
        %vm959 = vcmp.lt.s32.totalorder %v800, 0
        %v960 = vand.u32 %v800, 2139095040
        %v961 = vshrl.u32 %v960, 23
        %v962 = vsub.s32 %v961, 127
        %v963 = vand.u32 2147483647, %v800
        %v964 = vand.u32 %v963, 8388607
        %v965 = vor.u32 %v964, 8388608
        %v966 = vsub.s32 0, %v965
        %v967 = vadd.s32 %v962, 1
        %vm968 = vcmp.gt.s32.totalorder %v967, 0
        %v969 = vsel %vm968, %v967, 0
        %v970 = vshrl.u32 %v969, 5
        %v971 = vand.u32 %v969, 31
        %v972 = vsub.s32 32, %v971
        %v973 = vshrl.u32 683565275, %v972
        %v974 = vshll.u32 683565275, %v971
        %v975 = vshrl.u32 2475754826, %v972
        %v976 = vor.u32 %v974, %v975
        %v977 = vshll.u32 2475754826, %v971
        %v978 = vshrl.u32 2131351028, %v972
        %v979 = vor.u32 %v977, %v978
        %v980 = vshll.u32 2131351028, %v971
        %v981 = vshrl.u32 2102212464, %v972
        %v982 = vor.u32 %v980, %v981
        %v983 = vshll.u32 2102212464, %v971
        %v984 = vshrl.u32 920167782, %v972
        %v985 = vor.u32 %v983, %v984
        %v986 = vshll.u32 920167782, %v971
        %v987 = vshrl.u32 1326507024, %v972
        %v988 = vor.u32 %v986, %v987
        %vm989 = vcmp.lt.s32.totalorder %v970, 1
        %vm990 = vcmp.lt.s32.totalorder %v970, 2
        %vm991 = vcmp.lt.s32.totalorder %v970, 3
        %vm992 = vcmp.lt.s32.totalorder %v970, 4
        %v993 = vsel %vm989, %v973, %v976
        %v994 = vsel %vm992, %v982, 2102212464
        %v995 = vsel %vm991, %v979, %v994
        %v996 = vsel %vm990, %v993, %v995
        %v997 = vsel %vm989, %v976, %v979
        %v998 = vsel %vm992, %v985, 920167782
        %v999 = vsel %vm991, %v982, %v998
        %v1000 = vsel %vm990, %v997, %v999
        %v1001 = vsel %vm989, %v979, %v982
        %v1002 = vsel %vm992, %v988, 1326507024
        %v1003 = vsel %vm991, %v985, %v1002
        %v1004 = vsel %vm990, %v1001, %v1003
        %v1005 = vshll.u32 %v965, 8
        %v1006 = vand.u32 %v1005, 65535
        %v1007 = vshrl.u32 %v1005, 16
        %v1008 = vand.u32 %v1004, 65535
        %v1009 = vshrl.u32 %v1004, 16
        %v1010 = vmul.u32 %v1006, %v1008
        %v1011 = vmul.u32 %v1006, %v1009
        %v1012 = vmul.u32 %v1007, %v1008
        %v1013 = vmul.u32 %v1007, %v1009
        %v1014 = vshll.u32 %v1011, 16
        %v1015 = vshrl.u32 %v1011, 16
        %v1016 = vshll.u32 %v1012, 16
        %v1017 = vshrl.u32 %v1012, 16
        %vm1018 = vc.u32 %v1010, %v1014
        %v1019 = vsel %vm1018, 1, 0
        %v1020 = vadd.s32 %v1010, %v1014
        %v1021 = vadd.s32 %v1013, %v1019
        %vm1022 = vc.u32 %v1020, %v1016
        %v1023 = vsel %vm1022, 1, 0
        %v1024 = vadd.s32 %v1020, %v1016
        %v1025 = vadd.s32 %v1021, %v1023
        %v1026 = vadd.s32 %v1025, %v1015
        %v1027 = vadd.s32 %v1026, %v1017
        %v1028 = vand.u32 %v1005, 65535
        %v1029 = vshrl.u32 %v1005, 16
        %v1030 = vand.u32 %v1000, 65535
        %v1031 = vshrl.u32 %v1000, 16
        %v1032 = vmul.u32 %v1028, %v1030
        %v1033 = vmul.u32 %v1028, %v1031
        %v1034 = vmul.u32 %v1029, %v1030
        %v1035 = vmul.u32 %v1029, %v1031
        %v1036 = vshll.u32 %v1033, 16
        %v1037 = vshrl.u32 %v1033, 16
        %v1038 = vshll.u32 %v1034, 16
        %v1039 = vshrl.u32 %v1034, 16
        %vm1040 = vc.u32 %v1032, %v1036
        %v1041 = vsel %vm1040, 1, 0
        %v1042 = vadd.s32 %v1032, %v1036
        %v1043 = vadd.s32 %v1035, %v1041
        %vm1044 = vc.u32 %v1042, %v1038
        %v1045 = vsel %vm1044, 1, 0
        %v1046 = vadd.s32 %v1042, %v1038
        %v1047 = vadd.s32 %v1043, %v1045
        %v1048 = vadd.s32 %v1047, %v1037
        %v1049 = vadd.s32 %v1048, %v1039
        %v1050 = vmul.u32 %v1005, %v996
        %v1051 = vadd.s32 %v1027, %v1046
        %vm1052 = vc.u32 %v1027, %v1046
        %v1053 = vadd.s32 %v1049, 1
        %v1054 = vsel %vm1052, %v1053, %v1049
        %v1055 = vadd.s32 %v1050, %v1054
        %v1056 = vadd.s32 %v1055, 536870912
        %v1057 = vshrl.u32 %v1056, 30
        %v1058 = vshll.u32 %v1057, 30
        %v1059 = vsub.s32 %v1055, %v1058
        %vm1060 = vcmp.lt.s32.totalorder %v1059, 0
        %v1061 = vsub.s32 0, %v1059
        %v1062 = vsel %vm1060, %v1061, %v1059
        %v1063 = vclz %v1062
        %v1064 = vsub.s32 %v1063, 2
        %vm1065 = vcmp.gt.s32.totalorder 0, %v1064
        %v1066 = vsel %vm1065, 0, %v1064
        %v1067 = vsub.s32 32, %v1066
        %v1068 = vshll.u32 %v1059, %v1066
        %v1069 = vshrl.u32 %v1051, %v1067
        %v1070 = vor.u32 %v1068, %v1069
        %v1071 = vsub.s32 4294967266, %v1066
        %v1072 = vadd.s32 %v1071, 127
        %v1073 = vshll.u32 %v1072, 23
        %v1074 = vor.u32 4788187, %v1073
        %v1075 = vand.u32 2147483647, %v1074
        %v1077 = vcvt.s32.f32 %v1070
        %v1078 = vmul.f32 %v1077, %v1075
        %v1079 = vxor.u32 %v1078, 2147483648
        %v1080 = vsel %vm959, %v1079, %v1078
        %v1081 = vsub.s32 4, %v1057
        %v1082 = vsel %vm959, %v1081, %v1057
        %v1083 = vsel %vm958, %v800, %v1080
        %v1084 = vsel %vm958, 0, %v1082
        %v1085 = vmul.f32 %v1083, %v1083
        %v1086 = vmul.f32 %v1085, -0.001358992
        %v1087 = vadd.f32 %v1086, 0.041655596
        %v1088 = vmul.f32 %v1085, %v1087
        %v1089 = vadd.f32 %v1088, -0.4999988
        %v1090 = vmul.f32 %v1085, %v1089
        %v1091 = vadd.f32 1.0, %v1090
        %v1092 = vmul.f32 %v1083, %v1083
        %v1093 = vmul.f32 %v1092, -0.00019511016
        %v1094 = vadd.f32 %v1093, 0.008332121
        %v1095 = vmul.f32 %v1092, %v1094
        %v1096 = vadd.f32 %v1095, -0.16666654
        %v1097 = vmul.f32 %v1092, %v1096
        %v1098 = vadd.f32 %v1097, 1.0
        %v1099 = vmul.f32 %v1098, %v1083
        %vm1100 = vweird.f32 %v800
        %v1101 = vadd.s32 %v1084, 3
        %v1102 = vand.u32 %v1101, 3
        %vm1103 = vcmp.lt.s32.totalorder %v1102, 2
        %vm1104 = vcmp.eq.s32.totalorder %v1102, 0
        %v1105 = vxor.u32 %v1099, 2147483648
        %v1106 = vsel %vm1104, %v1091, %v1105
        %vm1107 = vcmp.eq.s32.totalorder %v1102, 2
        %v1108 = vxor.u32 %v1091, 2147483648
        %v1109 = vsel %vm1107, %v1108, %v1099
        %v1110 = vsel %vm1103, %v1106, %v1109
        %v1111 = vsel %vm1100, nan, %v1110
        %v1112 = vrot.slane %v328, 1
        %v1114 = vmul.f32 %v956, %v1112
        %v1116 = vrot.slane %v1114, 1
        %v1118 = vadd.f32 %v1114, %v1116
        %v1119 = vrot.slane %v328, 2
        %v1121 = vmul.f32 %v956, %v1119
        %v1122 = vmul.f32 %v956, %v328
        %v1124 = vrot.slane %v1122, 1
        %v1126 = vsub.f32 %v1121, %v1124
        %v1127 = vperm.slane %v328, 0
        %v1128 = vmul.f32 %v956, %v1127
        %v1129 = vperm.slane %v1118, 0
        %v1130 = vmul.f32 %v956, %v1129
        %v1132 = vrot.slane %v1130, 3
        %v1134 = vadd.f32 %v1128, %v1132
        %v1136 = vrot.slane %v1134, 2
        %v1138 = vmul.f32 %v1111, %v1136
        %v1139 = vperm.slane %v1126, 0
        %v1140 = vmul.f32 %v1111, %v1139
        %v1142 = vrot.slane %v1140, 3
        %v1144 = vadd.f32 %v1138, %v1142
        %v1145 = vadd.f32 %v1144, %v794
        %1146 = vst [vmem:[%s323] sm:$0x7] %v1145
        %s1147 = sand.u32 %s225, 1
        %s1148 = scalar_lea.sflag [#allocation3], %s1147
        %s1149 = sand.u32 %s225, 1
        %s1150 = smul.addr %s1149, 4
        %s1151 = scalar_lea.vmem [#allocation2], %s1150
        // Predicated region
        $region57: #{_ndp_forward.1} parent=55 // pred_check
          %p1152 = pneg %p235
        $region58: #{_ndp_forward.1} parent=55 // pred_check_branch
          %1154 = sbr.rel (%p1152) target = $region60
        $region59: #{_ndp_forward.1} parent=55 // pred_region
          %1156 = vsyncadd %s1148, 0
          %s1157 = smul.addr %s23, 4
          %s1158 = scalar_lea.hbm %s9, %s1157
          %s1160 = sshll.u32 %s1151, 4
          %s1161 = int_to_ptr.vmem [resolvable:$true] %s1160
          %s1162 = sshll.u32 %s1158, 4
          %s1163 = int_to_ptr.hbm [resolvable:$true] %s1162
          %1165 = dma.vmem_to_hbm [thread:$0]  %s1161, 64, %s1163, %s1148
        $region60: #{_ndp_forward.1} parent=55 // pred_fallthru
          _
      $region56: #{_ndp_forward.1} parent=5 // pred_fallthru
        _
      %p1166 = scmp.le.s32.totalorder 2, %s18
      // Predicated region
      $region61: #{_ndp_forward.1} parent=5 // pred_check
        %p1167 = pneg %p1166
      $region62: #{_ndp_forward.1} parent=5 // pred_check_branch
        %1169 = sbr.rel (%p1167) target = $region64
      $region63: #{_ndp_forward.1} parent=5 // pred_region
        %s1170 = ssub.s32 %s18, 2
        // Predicated region
        $region65: #{_ndp_forward.1} parent=63 // pred_check
          %p1171 = pneg %p241
        $region66: #{_ndp_forward.1} parent=63 // pred_check_branch
          %1173 = sbr.rel (%p1171) target = $region68
        $region67: #{_ndp_forward.1} parent=63 // pred_region
          %s1174 = sand.u32 %s226, 1
          %s1175 = scalar_lea.sflag [#allocation3], %s1174
          %s1176 = sand.u32 %s226, 1
          %s1177 = smul.addr %s1176, 4
          %s1178 = scalar_lea.vmem [#allocation2], %s1177
          %1180 = dma.done %s1175, 64
        $region68: #{_ndp_forward.1} parent=63 // pred_fallthru
          _
      $region64: #{_ndp_forward.1} parent=5 // pred_fallthru
        _
    $region6: #{_ndp_forward.1} parent=1 // loop_footer
      %s22 = sadd.s32 1, %s18
    $region7: #{_ndp_forward.1} parent=1 // loop_footer_branch
      %17 = sbr.rel target = $region3
    $region8: #{_ndp_forward.1} parent=1 // loop_exit
      _
    %1181 = vsyncpa [#allocation3], 1
    %s1182 = scalar_lea.sflag [#allocation3], 1
    %1183 = vsyncpa %s1182, 1

</llo_original>
